<compile_context>
chip_gen: v7x
topology: tpu7x:2x2x1
jax: 0.10.0
libtpu: 0.0.40
codegen_flags: <defaults>
</compile_context>

<pallas_src>
import jax
import jax.numpy as jnp
from jax.experimental import pallas as pl
from jax.experimental.pallas import tpu as pltpu


def _round_up(x: int, m: int) -> int:
    return (x + m - 1) // m * m


def _make_kernel(scaling: float):
    def kernel(x_ref, w_ref, a_ref, b_ref, o_ref, acc_ref, xa_ref):
        # grid = (g, mi, nj, k); K is the innermost reduction axis.
        nj = pl.program_id(2)
        k = pl.program_id(3)
        nk = pl.num_programs(3)

        @pl.when(k == 0)
        def _zero_acc():
            acc_ref[...] = jnp.zeros_like(acc_ref)

        @pl.when(jnp.logical_and(nj == 0, k == 0))
        def _zero_xa():
            xa_ref[...] = jnp.zeros_like(xa_ref)

        x = x_ref[0]  # (tm, tk), bf16

        # Base GEMM: accumulate (tm, tk) @ (tk, tn) in f32 on the MXU.
        acc_ref[...] += jnp.dot(x, w_ref[0], preferred_element_type=jnp.float32)

        # LoRA down-projection x @ A is independent of the N tile: accumulate it
        # only on the first N tile; the scratch is reused for nj > 0 (N axis is
        # marked "arbitrary", so per-(g, mi) iteration order is sequential).
        @pl.when(nj == 0)
        def _lora_down():
            xa_ref[...] += jnp.dot(x, a_ref[0],
                                   preferred_element_type=jnp.float32)

        # Epilogue (once per (g, mi, nj)): LoRA up-projection + scaled add.
        @pl.when(k == nk - 1)
        def _epilogue():
            # Apply `scaling` to the small (tm, r_pad) tensor, not the (tm, tn)
            # result (removes a full-width VPU multiply per tile).
            xa = (xa_ref[...] * scaling).astype(b_ref.dtype)
            lora = jnp.dot(xa, b_ref[0], preferred_element_type=jnp.float32)
            o_ref[0] = (acc_ref[...] + lora).astype(o_ref.dtype)

    return kernel


def grouped_gemm_lora_forward(x, w_base, lora_a, lora_b, *, scaling: float,
                              tm: int = 256, tn: int = 512, tk: int = 512,
                              compute_dtype=jnp.bfloat16):
    """Grouped-GEMM LoRA forward.

    x: [G, M, K], w_base: [G, K, N], lora_a: [G, K, r], lora_b: [G, r, N].
    Returns [G, M, N] in x.dtype (mirrors `result.to(torch_result_dtype)`).
    """
    G, M, K = x.shape
    _, _, N = w_base.shape
    r = lora_a.shape[-1]
    out_dtype = x.dtype

    # Clamp / align tiles: lane dims (last) to 128 multiples, sublane to 8.
    tm = min(tm, _round_up(M, 8))
    tk = min(tk, _round_up(K, 128))
    tn = min(tn, _round_up(N, 128))

    Mp = _round_up(M, tm)
    Kp = _round_up(K, tk)
    Np = _round_up(N, tn)
    rp = _round_up(r, 128)  # pad LoRA rank to a full lane width

    def _pad3(a, d1, d2):
        buf = jnp.zeros((G, d1, d2), compute_dtype)
        return buf.at[:, : a.shape[1], : a.shape[2]].set(a.astype(compute_dtype))

    xp = _pad3(x, Mp, Kp)
    wp = _pad3(w_base, Kp, Np)
    ap = _pad3(lora_a, Kp, rp)
    bp = _pad3(lora_b, rp, Np)

    grid = (G, Mp // tm, Np // tn, Kp // tk)

    out = pl.pallas_call(
        _make_kernel(float(scaling)),
        out_shape=jax.ShapeDtypeStruct((G, Mp, Np), out_dtype),
        grid_spec=pltpu.PrefetchScalarGridSpec(
            num_scalar_prefetch=0,
            grid=grid,
            in_specs=[
                pl.BlockSpec((1, tm, tk), lambda g, mi, nj, k: (g, mi, k)),   # x
                pl.BlockSpec((1, tk, tn), lambda g, mi, nj, k: (g, k, nj)),   # W
                pl.BlockSpec((1, tk, rp), lambda g, mi, nj, k: (g, k, 0)),    # A
                pl.BlockSpec((1, rp, tn), lambda g, mi, nj, k: (g, 0, nj)),   # B
            ],
            out_specs=pl.BlockSpec((1, tm, tn), lambda g, mi, nj, k: (g, mi, nj)),
            scratch_shapes=[
                pltpu.VMEM((tm, tn), jnp.float32),  # base/result accumulator
                pltpu.VMEM((tm, rp), jnp.float32),  # x @ A accumulator
            ],
        ),
        compiler_params=pltpu.CompilerParams(
            # G, M parallel (megacore); N arbitrary (xa scratch reused across
            # N tiles); K arbitrary (reduction over the output accumulator).
            dimension_semantics=("parallel", "parallel", "arbitrary", "arbitrary"),
            vmem_limit_bytes=48 * 1024 * 1024,  # headroom on v7x's 64 MiB VMEM
        ),
    )(xp, wp, ap, bp)

    return out[:, :M, :N]


def reference_forward(x, w_base, lora_a, lora_b, *, scaling: float):
    base = jnp.einsum("gmk,gkn->gmn", x, w_base)
    xa = jnp.einsum("gmk,gkr->gmr", x, lora_a)
    lora = jnp.einsum("gmr,grn->gmn", xa, lora_b)
    return base + lora * scaling


if __name__ == "__main__":
    # Module hyper-parameters (small, synthetic).
    groups = 2            # base_layer.groups
    in_features = 32      # K
    out_features = 32     # N
    rank = 8              # LoRA r
    lora_alpha = 16
    scaling = lora_alpha / rank
    tokens_per_group = 16  # M

    key = jax.random.PRNGKey(0)
    kx, kw, ka, kb = jax.random.split(key, 4)

    x = jax.random.normal(kx, (groups, tokens_per_group, in_features), jnp.float32)
    w_base = jax.random.normal(kw, (groups, in_features, out_features), jnp.float32) * 0.05
    # Standard LoRA init zeroes lora_B; small random values here so the LoRA
    # path is actually exercised (deterministic via PRNGKey(0)).
    lora_a = jax.random.normal(ka, (groups, in_features, rank), jnp.float32) * 0.1
    lora_b = jax.random.normal(kb, (groups, rank, out_features), jnp.float32) * 0.1

    out = grouped_gemm_lora_forward(x, w_base, lora_a, lora_b, scaling=scaling)
    out = jax.block_until_ready(out)

    # Reference mirrors the kernel's bf16 input rounding (f32 accumulation).
    as_bf16_f32 = lambda a: a.astype(jnp.bfloat16).astype(jnp.float32)
    ref = reference_forward(as_bf16_f32(x), as_bf16_f32(w_base),
                            as_bf16_f32(lora_a), as_bf16_f32(lora_b),
                            scaling=scaling)

    assert out.shape == (groups, tokens_per_group, out_features)
    assert out.dtype == x.dtype
    assert jnp.allclose(out, ref, atol=3e-2, rtol=3e-2), "mismatch vs reference"

    # TODO(synk): dropout>0, mixed-batch adapter_names, DoRA magnitude vector,
    # and ragged per-group token counts (scalar-prefetched offsets) are not
    # implemented (not the hot path here).
    print("KERNEL_OK")
</pallas_src>

<mosaic_0001>
module attributes {stable_mosaic.version = 11 : i64} {
  func.func @kernel(%arg0: i32, %arg1: i32, %arg2: i32, %arg3: i32, %arg4: memref<1x16x128xbf16, #tpu.memory_space<vmem>>, %arg5: memref<1x128x128xbf16, #tpu.memory_space<vmem>>, %arg6: memref<1x128x128xbf16, #tpu.memory_space<vmem>>, %arg7: memref<1x128x128xbf16, #tpu.memory_space<vmem>>, %arg8: memref<1x16x128xf32, #tpu.memory_space<vmem>>, %arg9: memref<16x128xf32, #tpu.memory_space<vmem>>, %arg10: memref<16x128xf32, #tpu.memory_space<vmem>>) attributes {dimension_semantics = [#tpu.dimension_semantics<parallel>, #tpu.dimension_semantics<parallel>, #tpu.dimension_semantics<arbitrary>, #tpu.dimension_semantics<arbitrary>], iteration_bounds = array<i64: 2, 1, 1, 1>, scalar_prefetch = 0 : i64, scratch_operands = 2 : i64, tpu.core_type = #tpu.core_type<tc>, window_params = [{transform_indices = @transform_0, window_bounds = array<i64: 1, 16, 128>}, {transform_indices = @transform_1, window_bounds = array<i64: 1, 128, 128>}, {transform_indices = @transform_2, window_bounds = array<i64: 1, 128, 128>}, {transform_indices = @transform_3, window_bounds = array<i64: 1, 128, 128>}, {transform_indices = @transform_4, window_bounds = array<i64: 1, 16, 128>}]} {
    %c0_i32 = arith.constant 0 : i32
    %0 = arith.cmpi eq, %arg3, %c0_i32 : i32
    %1 = arith.extui %0 : i1 to i32
    %c0_i32_0 = arith.constant 0 : i32
    %2 = arith.cmpi ne, %1, %c0_i32_0 : i32
    scf.if %2 {
      %cst_17 = arith.constant 0.000000e+00 : f32
      %22 = vector.broadcast %cst_17 : f32 to vector<16x128xf32>
      %c0_18 = arith.constant 0 : index
      %c0_19 = arith.constant 0 : index
      %23 = vector.load %arg9[%c0_18, %c0_19] : memref<16x128xf32, #tpu.memory_space<vmem>>, vector<16x128xf32>
      tpu.vector_store %arg9[%c0_18, %c0_19], %22 {strides = array<i32>} : memref<16x128xf32, #tpu.memory_space<vmem>>, vector<16x128xf32>,
    } else {
    }
    %c0_i32_1 = arith.constant 0 : i32
    %3 = arith.cmpi eq, %arg2, %c0_i32_1 : i32
    %c0_i32_2 = arith.constant 0 : i32
    %4 = arith.cmpi eq, %arg3, %c0_i32_2 : i32
    %5 = arith.andi %3, %4 : i1
    %6 = arith.extui %5 : i1 to i32
    %c0_i32_3 = arith.constant 0 : i32
    %7 = arith.cmpi ne, %6, %c0_i32_3 : i32
    scf.if %7 {
      %cst_17 = arith.constant 0.000000e+00 : f32
      %22 = vector.broadcast %cst_17 : f32 to vector<16x128xf32>
      %c0_18 = arith.constant 0 : index
      %c0_19 = arith.constant 0 : index
      %23 = vector.load %arg10[%c0_18, %c0_19] : memref<16x128xf32, #tpu.memory_space<vmem>>, vector<16x128xf32>
      tpu.vector_store %arg10[%c0_18, %c0_19], %22 {strides = array<i32>} : memref<16x128xf32, #tpu.memory_space<vmem>>, vector<16x128xf32>,
    } else {
    }
    %c0 = arith.constant 0 : index
    %c0_4 = arith.constant 0 : index
    %c0_5 = arith.constant 0 : index
    %8 = vector.load %arg4[%c0, %c0_4, %c0_5] : memref<1x16x128xbf16, #tpu.memory_space<vmem>>, vector<1x16x128xbf16>
    %9 = vector.shape_cast %8 : vector<1x16x128xbf16> to vector<16x128xbf16>
    %c0_6 = arith.constant 0 : index
    %c0_7 = arith.constant 0 : index
    %10 = vector.load %arg9[%c0_6, %c0_7] : memref<16x128xf32, #tpu.memory_space<vmem>>, vector<16x128xf32>
    %c0_8 = arith.constant 0 : index
    %c0_9 = arith.constant 0 : index
    %c0_10 = arith.constant 0 : index
    %11 = vector.load %arg5[%c0_8, %c0_9, %c0_10] : memref<1x128x128xbf16, #tpu.memory_space<vmem>>, vector<1x128x128xbf16>
    %12 = vector.shape_cast %11 : vector<1x128x128xbf16> to vector<128x128xbf16>
    %cst = arith.constant dense<0.000000e+00> : vector<16x128xf32>
    %13 = tpu.matmul %9, %12, %cst {dimension_numbers = #tpu.dot_dimension_numbers<[1], [0], [0], [1], [0, 0, 1, 1], [], []>} : vector<16x128xbf16>, vector<128x128xbf16>, vector<16x128xf32> -> vector<16x128xf32>
    %14 = arith.addf %10, %13 : vector<16x128xf32>
    %c0_11 = arith.constant 0 : index
    %c0_12 = arith.constant 0 : index
    %15 = vector.load %arg9[%c0_11, %c0_12] : memref<16x128xf32, #tpu.memory_space<vmem>>, vector<16x128xf32>
    tpu.vector_store %arg9[%c0_11, %c0_12], %14 {strides = array<i32>} : memref<16x128xf32, #tpu.memory_space<vmem>>, vector<16x128xf32>,
    %c0_i32_13 = arith.constant 0 : i32
    %16 = arith.cmpi eq, %arg2, %c0_i32_13 : i32
    %17 = arith.extui %16 : i1 to i32
    %c0_i32_14 = arith.constant 0 : i32
    %18 = arith.cmpi ne, %17, %c0_i32_14 : i32
    scf.if %18 {
      %c0_17 = arith.constant 0 : index
      %c0_18 = arith.constant 0 : index
      %22 = vector.load %arg10[%c0_17, %c0_18] : memref<16x128xf32, #tpu.memory_space<vmem>>, vector<16x128xf32>
      %c0_19 = arith.constant 0 : index
      %c0_20 = arith.constant 0 : index
      %c0_21 = arith.constant 0 : index
      %23 = vector.load %arg6[%c0_19, %c0_20, %c0_21] : memref<1x128x128xbf16, #tpu.memory_space<vmem>>, vector<1x128x128xbf16>
      %24 = vector.shape_cast %23 : vector<1x128x128xbf16> to vector<128x128xbf16>
      %cst_22 = arith.constant dense<0.000000e+00> : vector<16x128xf32>
      %25 = tpu.matmul %9, %24, %cst_22 {dimension_numbers = #tpu.dot_dimension_numbers<[1], [0], [0], [1], [0, 0, 1, 1], [], []>} : vector<16x128xbf16>, vector<128x128xbf16>, vector<16x128xf32> -> vector<16x128xf32>
      %26 = arith.addf %22, %25 : vector<16x128xf32>
      %c0_23 = arith.constant 0 : index
      %c0_24 = arith.constant 0 : index
      %27 = vector.load %arg10[%c0_23, %c0_24] : memref<16x128xf32, #tpu.memory_space<vmem>>, vector<16x128xf32>
      tpu.vector_store %arg10[%c0_23, %c0_24], %26 {strides = array<i32>} : memref<16x128xf32, #tpu.memory_space<vmem>>, vector<16x128xf32>,
    } else {
    }
    %c0_i32_15 = arith.constant 0 : i32
    %19 = arith.cmpi eq, %arg3, %c0_i32_15 : i32
    %20 = arith.extui %19 : i1 to i32
    %c0_i32_16 = arith.constant 0 : i32
    %21 = arith.cmpi ne, %20, %c0_i32_16 : i32
    scf.if %21 {
      %c0_17 = arith.constant 0 : index
      %c0_18 = arith.constant 0 : index
      %22 = vector.load %arg10[%c0_17, %c0_18] : memref<16x128xf32, #tpu.memory_space<vmem>>, vector<16x128xf32>
      %cst_19 = arith.constant 2.000000e+00 : f32
      %23 = vector.broadcast %cst_19 : f32 to vector<16x128xf32>
      %24 = arith.mulf %22, %23 : vector<16x128xf32>
      %25 = arith.truncf %24 : vector<16x128xf32> to vector<16x128xbf16>
      %c0_20 = arith.constant 0 : index
      %c0_21 = arith.constant 0 : index
      %c0_22 = arith.constant 0 : index
      %26 = vector.load %arg7[%c0_20, %c0_21, %c0_22] : memref<1x128x128xbf16, #tpu.memory_space<vmem>>, vector<1x128x128xbf16>
      %27 = vector.shape_cast %26 : vector<1x128x128xbf16> to vector<128x128xbf16>
      %cst_23 = arith.constant dense<0.000000e+00> : vector<16x128xf32>
      %28 = tpu.matmul %25, %27, %cst_23 {dimension_numbers = #tpu.dot_dimension_numbers<[1], [0], [0], [1], [0, 0, 1, 1], [], []>} : vector<16x128xbf16>, vector<128x128xbf16>, vector<16x128xf32> -> vector<16x128xf32>
      %c0_24 = arith.constant 0 : index
      %c0_25 = arith.constant 0 : index
      %29 = vector.load %arg9[%c0_24, %c0_25] : memref<16x128xf32, #tpu.memory_space<vmem>>, vector<16x128xf32>
      %30 = arith.addf %29, %28 : vector<16x128xf32>
      %c0_26 = arith.constant 0 : index
      %c0_27 = arith.constant 0 : index
      %c0_28 = arith.constant 0 : index
      %31 = vector.load %arg8[%c0_26, %c0_27, %c0_28] : memref<1x16x128xf32, #tpu.memory_space<vmem>>, vector<1x16x128xf32>
      %32 = vector.shape_cast %31 : vector<1x16x128xf32> to vector<16x128xf32>
      %33 = vector.shape_cast %30 : vector<16x128xf32> to vector<1x16x128xf32>
      tpu.vector_store %arg8[%c0_26, %c0_27, %c0_28], %33 {strides = array<i32>} : memref<1x16x128xf32, #tpu.memory_space<vmem>>, vector<1x16x128xf32>,
    } else {
    }
    return
  }
  func.func @transform_0(%arg0: i32, %arg1: i32, %arg2: i32, %arg3: i32) -> (i32, i32, i32) {
    %c0_i32 = arith.constant 0 : i32
    return %arg0, %arg1, %arg3 : i32, i32, i32
  }
  func.func @transform_1(%arg0: i32, %arg1: i32, %arg2: i32, %arg3: i32) -> (i32, i32, i32) {
    %c0_i32 = arith.constant 0 : i32
    return %arg0, %arg3, %arg2 : i32, i32, i32
  }
  func.func @transform_2(%arg0: i32, %arg1: i32, %arg2: i32, %arg3: i32) -> (i32, i32, i32) {
    %c0_i32 = arith.constant 0 : i32
    %c0_i32_0 = arith.constant 0 : i32
    return %arg0, %arg3, %c0_i32 : i32, i32, i32
  }
  func.func @transform_3(%arg0: i32, %arg1: i32, %arg2: i32, %arg3: i32) -> (i32, i32, i32) {
    %c0_i32 = arith.constant 0 : i32
    %c0_i32_0 = arith.constant 0 : i32
    return %arg0, %c0_i32, %arg2 : i32, i32, i32
  }
  func.func @transform_4(%arg0: i32, %arg1: i32, %arg2: i32, %arg3: i32) -> (i32, i32, i32) {
    %c0_i32 = arith.constant 0 : i32
    return %arg0, %arg1, %arg2 : i32, i32, i32
  }
}

</mosaic_0001>

<llo_original>
// kernel: tpu_custom_call.1
$region0: #{tpu_custom_call.1}
  #allocation0 [shape = 'u32[]', space=smem, size = 0x4, offset = 0x4, fixed_abs, tag = 'smem constant byte address 0x4 - core index']
  #allocation1 [shape = 'u32[144,128]{1,0:T(1,128)}', space=vmem, size = 0x12000, scoped, tag = 'internal scratch']
  #allocation2 [shape = 'f32[16,128]{1,0:T(8,128)}', space=vmem, size = 0x2000, scoped, tag = 'scratch operand']
  #allocation3 [shape = 'f32[16,128]{1,0:T(8,128)}', space=vmem, size = 0x2000, scoped, tag = 'scratch operand']
  %s0 = inlined_call_operand.hbm [shape: bf16[2,16,128], index: 0, kind: input, shape index: {}]
  %s1 = inlined_call_operand.hbm [shape: bf16[2,128,128], index: 1, kind: input, shape index: {}]
  %s2 = inlined_call_operand.hbm [shape: bf16[2,128,128], index: 2, kind: input, shape index: {}]
  %s3 = inlined_call_operand.hbm [shape: bf16[2,128,128], index: 3, kind: input, shape index: {}]
  %s4 = inlined_call_operand.hbm [shape: f32[2,16,128], index: 4, kind: output, shape index: {}]
  %s5 = sld [smem:[#allocation0]]
  $region81: #{tpu_custom_call.1} parent=0
    _
  %s7 = ssub.s32 1, %s5
  %s8 = scalar_select 0, %s7, %s5
  $region1: #{tpu_custom_call.1} parent=0
    #allocation4 [shape = 'u8[8192]{0}', space=vmem, size = 0x2000, scoped, tag = 'input window, operand 0']
    #allocation5 [shape = 's32[2]{0}', space=sflag, size = 0x8, scoped, tag = 'scoped memory for tpu_custom_call.1']
    #allocation6 [shape = 's32[2]{0}', space=sflag, size = 0x8, scoped, tag = 'scoped memory for tpu_custom_call.1']
    #allocation7 [shape = 'u8[65536]{0}', space=vmem, size = 0x10000, scoped, tag = 'input window, operand 1']
    #allocation8 [shape = 's32[2]{0}', space=sflag, size = 0x8, scoped, tag = 'scoped memory for tpu_custom_call.1']
    #allocation9 [shape = 'u8[65536]{0}', space=vmem, size = 0x10000, scoped, tag = 'input window, operand 2']
    #allocation10 [shape = 'u8[65536]{0}', space=vmem, size = 0x10000, scoped, tag = 'input window, operand 3']
    #allocation11 [shape = 's32[2]{0}', space=sflag, size = 0x8, scoped, tag = 'scoped memory for tpu_custom_call.1']
    #allocation12 [shape = 'u8[16384]{0}', space=vmem, size = 0x4000, scoped, tag = 'output window, operand 0']
    %9 = vsyncpa [#allocation5], 0
    %s10 = scalar_lea.sflag [#allocation5], 1
    %11 = vsyncpa %s10, 0
    %12 = vsyncpa [#allocation8], 0
    %s13 = scalar_lea.sflag [#allocation8], 1
    %14 = vsyncpa %s13, 0
    %15 = vsyncpa [#allocation11], 0
    %s16 = scalar_lea.sflag [#allocation11], 1
    %17 = vsyncpa %s16, 0
    %18 = vsyncpa [#allocation6], 0
    %s19 = scalar_lea.sflag [#allocation6], 1
    %20 = vsyncpa %s19, 0
    loop: start=0, step=1, limit=4
    $region2: #{tpu_custom_call.1} parent=1 // loop_pre_header
      _
    $region3: #{tpu_custom_call.1} parent=1 // loop_header
      %s22 = sphi 0, %s26
      %p23 = scmp.ge.s32.totalorder %s22, 4
      %s29 = sphi 0, %s55
      %s30 = sphi 0, %s51
      %s31 = sphi 0, %s47
      %s32 = sphi 0, %s43
      %s33 = sphi 0, %s29
      %s34 = sphi 0, %s30
      %s35 = sphi 0, %s31
      %s36 = sphi 0, %s32
      %s37 = sphi 0, %s33
      %s38 = sphi 0, %s34
      %s39 = sphi 0, %s35
      %s40 = sphi 0, %s36
      %s62 = sphi 0, %s64
      %s65 = sphi 0, %s62
      %s66 = sphi 0, %s65
      %s82 = sphi 0, %s66
      %s92 = sphi 0, %s94
      %s95 = sphi 0, %s92
      %s96 = sphi 0, %s95
      %s112 = sphi 0, %s96
      %s120 = sphi 0, %s122
      %s123 = sphi 0, %s120
      %s124 = sphi 0, %s123
      %s140 = sphi 0, %s124
      %s148 = sphi 0, %s150
      %s151 = sphi 0, %s148
      %s152 = sphi 0, %s151
      %s168 = sphi 0, %s152
      %s178 = sphi 0, %s180
      %s181 = sphi 0, %s178
      %s182 = sphi 0, %s181
      %s198 = sphi 0, %s182
    $region4: #{tpu_custom_call.1} parent=1 // loop_header_branch
      %25 = sbr.rel (%p23) target = $region8
    $region5: #{tpu_custom_call.1} parent=1 // loop_body
      %s27 = ssub.s32 %s22, 1
      %s28 = ssub.s32 %s22, 2
      %s41 = sadd.s32 1, %s32
      %p42 = scmp.ge.s32.totalorder %s41, 1
      %s43 = scalar_select %p42, 0, %s41
      %s44 = sadd.s32 1, %s31
      %s45 = scalar_select %p42, %s44, %s31
      %p46 = scmp.ge.s32.totalorder %s45, 1
      %s47 = scalar_select %p46, 0, %s45
      %s48 = sadd.s32 1, %s30
      %s49 = scalar_select %p46, %s48, %s30
      %p50 = scmp.ge.s32.totalorder %s49, 1
      %s51 = scalar_select %p50, 0, %s49
      %s52 = sadd.s32 1, %s29
      %s53 = scalar_select %p50, %s52, %s29
      %p54 = scmp.ge.s32.totalorder %s53, 2
      %s55 = scalar_select %p54, 0, %s53
      %s56 = ssub.s32 %s29, %s55
      %s57 = ssub.s32 %s30, %s51
      %s58 = sor.u32 %s56, %s57
      %s59 = ssub.s32 %s32, %s43
      %s60 = sor.u32 %s58, %s59
      %p61 = scmp.eq.s32.totalorder %s60, 0
      %s63 = sadd.s32 %s62, 1
      %s64 = scalar_select %p61, %s62, %s63
      %p67 = pneg %p61
      %p68 = scmp.eq.s32.totalorder %s22, 1
      %p69 = por %p67, %p68
      %p70 = scmp.ne.s32.totalorder %s62, %s65
      %p71 = scmp.eq.s32.totalorder %s22, 0
      %p72 = por %p70, %p71
      %p73 = scmp.ne.s32.totalorder %s62, %s65
      %p74 = scmp.eq.s32.totalorder %s27, 1
      %p75 = por %p73, %p74
      %p76 = scmp.ne.s32.totalorder %s65, %s66
      %p77 = scmp.eq.s32.totalorder %s27, 0
      %p78 = por %p76, %p77
      %p79 = scmp.ne.s32.totalorder %s65, %s66
      %p80 = scmp.eq.s32.totalorder %s28, 1
      %p81 = por %p79, %p80
      %p83 = scmp.ne.s32.totalorder %s66, %s82
      %p84 = scmp.eq.s32.totalorder %s28, 0
      %p85 = por %p83, %p84
      %s86 = ssub.s32 %s29, %s55
      %s87 = ssub.s32 %s32, %s43
      %s88 = sor.u32 %s86, %s87
      %s89 = ssub.s32 %s31, %s47
      %s90 = sor.u32 %s88, %s89
      %p91 = scmp.eq.s32.totalorder %s90, 0
      %s93 = sadd.s32 %s92, 1
      %s94 = scalar_select %p91, %s92, %s93
      %p97 = pneg %p91
      %p98 = scmp.eq.s32.totalorder %s22, 1
      %p99 = por %p97, %p98
      %p100 = scmp.ne.s32.totalorder %s92, %s95
      %p101 = scmp.eq.s32.totalorder %s22, 0
      %p102 = por %p100, %p101
      %p103 = scmp.ne.s32.totalorder %s92, %s95
      %p104 = scmp.eq.s32.totalorder %s27, 1
      %p105 = por %p103, %p104
      %p106 = scmp.ne.s32.totalorder %s95, %s96
      %p107 = scmp.eq.s32.totalorder %s27, 0
      %p108 = por %p106, %p107
      %p109 = scmp.ne.s32.totalorder %s95, %s96
      %p110 = scmp.eq.s32.totalorder %s28, 1
      %p111 = por %p109, %p110
      %p113 = scmp.ne.s32.totalorder %s96, %s112
      %p114 = scmp.eq.s32.totalorder %s28, 0
      %p115 = por %p113, %p114
      %s116 = ssub.s32 %s29, %s55
      %s117 = ssub.s32 %s32, %s43
      %s118 = sor.u32 %s116, %s117
      %p119 = scmp.eq.s32.totalorder %s118, 0
      %s121 = sadd.s32 %s120, 1
      %s122 = scalar_select %p119, %s120, %s121
      %p125 = pneg %p119
      %p126 = scmp.eq.s32.totalorder %s22, 1
      %p127 = por %p125, %p126
      %p128 = scmp.ne.s32.totalorder %s120, %s123
      %p129 = scmp.eq.s32.totalorder %s22, 0
      %p130 = por %p128, %p129
      %p131 = scmp.ne.s32.totalorder %s120, %s123
      %p132 = scmp.eq.s32.totalorder %s27, 1
      %p133 = por %p131, %p132
      %p134 = scmp.ne.s32.totalorder %s123, %s124
      %p135 = scmp.eq.s32.totalorder %s27, 0
      %p136 = por %p134, %p135
      %p137 = scmp.ne.s32.totalorder %s123, %s124
      %p138 = scmp.eq.s32.totalorder %s28, 1
      %p139 = por %p137, %p138
      %p141 = scmp.ne.s32.totalorder %s124, %s140
      %p142 = scmp.eq.s32.totalorder %s28, 0
      %p143 = por %p141, %p142
      %s144 = ssub.s32 %s29, %s55
      %s145 = ssub.s32 %s31, %s47
      %s146 = sor.u32 %s144, %s145
      %p147 = scmp.eq.s32.totalorder %s146, 0
      %s149 = sadd.s32 %s148, 1
      %s150 = scalar_select %p147, %s148, %s149
      %p153 = pneg %p147
      %p154 = scmp.eq.s32.totalorder %s22, 1
      %p155 = por %p153, %p154
      %p156 = scmp.ne.s32.totalorder %s148, %s151
      %p157 = scmp.eq.s32.totalorder %s22, 0
      %p158 = por %p156, %p157
      %p159 = scmp.ne.s32.totalorder %s148, %s151
      %p160 = scmp.eq.s32.totalorder %s27, 1
      %p161 = por %p159, %p160
      %p162 = scmp.ne.s32.totalorder %s151, %s152
      %p163 = scmp.eq.s32.totalorder %s27, 0
      %p164 = por %p162, %p163
      %p165 = scmp.ne.s32.totalorder %s151, %s152
      %p166 = scmp.eq.s32.totalorder %s28, 1
      %p167 = por %p165, %p166
      %p169 = scmp.ne.s32.totalorder %s152, %s168
      %p170 = scmp.eq.s32.totalorder %s28, 0
      %p171 = por %p169, %p170
      %s172 = ssub.s32 %s29, %s55
      %s173 = ssub.s32 %s30, %s51
      %s174 = sor.u32 %s172, %s173
      %s175 = ssub.s32 %s31, %s47
      %s176 = sor.u32 %s174, %s175
      %p177 = scmp.eq.s32.totalorder %s176, 0
      %s179 = sadd.s32 %s178, 1
      %s180 = scalar_select %p177, %s178, %s179
      %p183 = pneg %p177
      %p184 = scmp.eq.s32.totalorder %s22, 1
      %p185 = por %p183, %p184
      %p186 = scmp.ne.s32.totalorder %s178, %s181
      %p187 = scmp.eq.s32.totalorder %s22, 0
      %p188 = por %p186, %p187
      %p189 = scmp.ne.s32.totalorder %s178, %s181
      %p190 = scmp.eq.s32.totalorder %s27, 1
      %p191 = por %p189, %p190
      %p192 = scmp.ne.s32.totalorder %s181, %s182
      %p193 = scmp.eq.s32.totalorder %s27, 0
      %p194 = por %p192, %p193
      %p195 = scmp.ne.s32.totalorder %s181, %s182
      %p196 = scmp.eq.s32.totalorder %s28, 1
      %p197 = por %p195, %p196
      %p199 = scmp.ne.s32.totalorder %s182, %s198
      %p200 = scmp.eq.s32.totalorder %s28, 0
      %p201 = por %p199, %p200
      %p202 = scmp.le.s32.totalorder 1, %s22
      %p203 = scmp.lt.s32.totalorder %s22, 3
      %p204 = pnand %p202, %p203
      %p205 = pneg %p204
      // Predicated region
      $region9: #{tpu_custom_call.1} parent=5 // pred_check
        _
      $region10: #{tpu_custom_call.1} parent=5 // pred_check_branch
        %207 = sbr.rel (%p204) target = $region12
      $region11: #{tpu_custom_call.1} parent=5 // pred_region
        %s208 = ssub.s32 %s22, 1
      $region12: #{tpu_custom_call.1} parent=5 // pred_fallthru
        _
      %p209 = scmp.lt.s32.totalorder %s22, 2
      // Predicated region
      $region13: #{tpu_custom_call.1} parent=5 // pred_check
        %p210 = pneg %p209
      $region14: #{tpu_custom_call.1} parent=5 // pred_check_branch
        %212 = sbr.rel (%p210) target = $region16
      $region15: #{tpu_custom_call.1} parent=5 // pred_region
        // Predicated region
        $region17: #{tpu_custom_call.1} parent=15 // pred_check
          %p213 = pneg %p72
        $region18: #{tpu_custom_call.1} parent=15 // pred_check_branch
          %215 = sbr.rel (%p213) target = $region20
        $region19: #{tpu_custom_call.1} parent=15 // pred_region
          %s216 = sand.u32 %s62, 1
          %s217 = scalar_lea.sflag [#allocation5], %s216
          %s218 = sand.u32 %s62, 1
          %s219 = smul.addr %s218, 8
          %s220 = scalar_lea.vmem [#allocation4], %s219
          %s221 = smul.u32 2, %s30
          %s223 = ssub.s32 128, 128
          %224 = vsyncadd %s217, %s223
          %s225 = sadd.s32 %s32, %s221
          %s226 = smul.addr %s29, 2
          %s227 = sadd.s32 %s225, %s226
          %s228 = smul.addr %s227, 64
          %s229 = scalar_lea.hbm %s0, %s228
          %s230 = sshll.u32 %s220, 4
          %s231 = int_to_ptr.vmem [resolvable:$true] %s230
          %236 = dma.hbm_to_vmem [thread:$0]  %s229, 128, %s231, %s217, 64, 64, 4
        $region20: #{tpu_custom_call.1} parent=15 // pred_fallthru
          _
        // Predicated region
        $region21: #{tpu_custom_call.1} parent=15 // pred_check
          %p237 = pneg %p102
        $region22: #{tpu_custom_call.1} parent=15 // pred_check_branch
          %239 = sbr.rel (%p237) target = $region24
        $region23: #{tpu_custom_call.1} parent=15 // pred_region
          %s240 = sand.u32 %s22, 1
          %s241 = scalar_lea.sflag [#allocation8], %s240
          %s242 = sand.u32 %s92, 1
          %s243 = smul.addr %s242, 64
          %s244 = scalar_lea.vmem [#allocation7], %s243
          %s245 = smul.u32 16, %s32
          %s247 = ssub.s32 1024, 1024
          %248 = vsyncadd %s241, %s247
          %s249 = sadd.s32 %s31, %s245
          %s250 = smul.addr %s29, 16
          %s251 = sadd.s32 %s249, %s250
          %s252 = smul.addr %s251, 64
          %s253 = scalar_lea.hbm %s1, %s252
          %s254 = sshll.u32 %s244, 4
          %s255 = int_to_ptr.vmem [resolvable:$true] %s254
          %260 = dma.hbm_to_vmem [thread:$0]  %s253, 1024, %s255, %s241, 64, 64, 4
        $region24: #{tpu_custom_call.1} parent=15 // pred_fallthru
          _
        // Predicated region
        $region25: #{tpu_custom_call.1} parent=15 // pred_check
          %p261 = pneg %p130
        $region26: #{tpu_custom_call.1} parent=15 // pred_check_branch
          %263 = sbr.rel (%p261) target = $region28
        $region27: #{tpu_custom_call.1} parent=15 // pred_region
          %s264 = sand.u32 %s22, 1
          %s265 = scalar_lea.sflag [#allocation8], %s264
          %s266 = sand.u32 %s120, 1
          %s267 = smul.addr %s266, 64
          %s268 = scalar_lea.vmem [#allocation9], %s267
          %s269 = smul.u32 16, %s32
          %s271 = ssub.s32 1024, 1024
          %272 = vsyncadd %s265, %s271
          %s273 = smul.addr %s29, 16
          %s274 = sadd.s32 %s269, %s273
          %s275 = smul.addr %s274, 64
          %s276 = scalar_lea.hbm %s2, %s275
          %s277 = sshll.u32 %s268, 4
          %s278 = int_to_ptr.vmem [resolvable:$true] %s277
          %283 = dma.hbm_to_vmem [thread:$0]  %s276, 1024, %s278, %s265, 64, 64, 4
        $region28: #{tpu_custom_call.1} parent=15 // pred_fallthru
          _
        // Predicated region
        $region29: #{tpu_custom_call.1} parent=15 // pred_check
          %p284 = pneg %p158
        $region30: #{tpu_custom_call.1} parent=15 // pred_check_branch
          %286 = sbr.rel (%p284) target = $region32
        $region31: #{tpu_custom_call.1} parent=15 // pred_region
          %s287 = sand.u32 %s148, 1
          %s288 = scalar_lea.sflag [#allocation11], %s287
          %s289 = sand.u32 %s148, 1
          %s290 = smul.addr %s289, 64
          %s291 = scalar_lea.vmem [#allocation10], %s290
          %s293 = ssub.s32 1024, 1024
          %294 = vsyncadd %s288, %s293
          %s295 = smul.addr %s29, 16
          %s296 = sadd.s32 %s31, %s295
          %s297 = smul.addr %s296, 64
          %s298 = scalar_lea.hbm %s3, %s297
          %s299 = sshll.u32 %s291, 4
          %s300 = int_to_ptr.vmem [resolvable:$true] %s299
          %305 = dma.hbm_to_vmem [thread:$0]  %s298, 1024, %s300, %s288, 64, 64, 4
        $region32: #{tpu_custom_call.1} parent=15 // pred_fallthru
          _
      $region16: #{tpu_custom_call.1} parent=5 // pred_fallthru
        _
      %p306 = scmp.le.s32.totalorder 1, %s22
      %p307 = scmp.lt.s32.totalorder %s22, 3
      %p308 = pnand %p306, %p307
      %p309 = pneg %p308
      // Predicated region
      $region33: #{tpu_custom_call.1} parent=5 // pred_check
        _
      $region34: #{tpu_custom_call.1} parent=5 // pred_check_branch
        %311 = sbr.rel (%p308) target = $region36
      $region35: #{tpu_custom_call.1} parent=5 // pred_region
        %s312 = ssub.s32 %s22, 1
        %s313 = sand.u32 %s65, 1
        %s314 = scalar_lea.sflag [#allocation5], %s313
        %s315 = sand.u32 %s65, 1
        %s316 = smul.addr %s315, 8
        %s317 = scalar_lea.vmem [#allocation4], %s316
        // Predicated region
        $region37: #{tpu_custom_call.1} parent=35 // pred_check
          %p318 = pneg %p78
        $region38: #{tpu_custom_call.1} parent=35 // pred_check_branch
          %320 = sbr.rel (%p318) target = $region40
        $region39: #{tpu_custom_call.1} parent=35 // pred_region
          %321 = dma.done %s314, 128
        $region40: #{tpu_custom_call.1} parent=35 // pred_fallthru
          _
        %s322 = sand.u32 %s27, 1
        %s323 = scalar_lea.sflag [#allocation8], %s322
        %s324 = sand.u32 %s95, 1
        %s325 = smul.addr %s324, 64
        %s326 = scalar_lea.vmem [#allocation7], %s325
        // Predicated region
        $region41: #{tpu_custom_call.1} parent=35 // pred_check
          %p327 = pneg %p108
        $region42: #{tpu_custom_call.1} parent=35 // pred_check_branch
          %329 = sbr.rel (%p327) target = $region44
        $region43: #{tpu_custom_call.1} parent=35 // pred_region
          %330 = dma.done %s323, 1024
        $region44: #{tpu_custom_call.1} parent=35 // pred_fallthru
          _
        %s331 = sand.u32 %s27, 1
        %s332 = scalar_lea.sflag [#allocation8], %s331
        %s333 = sand.u32 %s123, 1
        %s334 = smul.addr %s333, 64
        %s335 = scalar_lea.vmem [#allocation9], %s334
        // Predicated region
        $region45: #{tpu_custom_call.1} parent=35 // pred_check
          %p336 = pneg %p136
        $region46: #{tpu_custom_call.1} parent=35 // pred_check_branch
          %338 = sbr.rel (%p336) target = $region48
        $region47: #{tpu_custom_call.1} parent=35 // pred_region
          %339 = dma.done %s332, 1024
        $region48: #{tpu_custom_call.1} parent=35 // pred_fallthru
          _
        %s340 = sand.u32 %s151, 1
        %s341 = scalar_lea.sflag [#allocation11], %s340
        %s342 = sand.u32 %s151, 1
        %s343 = smul.addr %s342, 64
        %s344 = scalar_lea.vmem [#allocation10], %s343
        // Predicated region
        $region49: #{tpu_custom_call.1} parent=35 // pred_check
          %p345 = pneg %p164
        $region50: #{tpu_custom_call.1} parent=35 // pred_check_branch
          %347 = sbr.rel (%p345) target = $region52
        $region51: #{tpu_custom_call.1} parent=35 // pred_region
          %348 = dma.done %s341, 1024
        $region52: #{tpu_custom_call.1} parent=35 // pred_fallthru
          _
        %s349 = sand.u32 %s65, 1
        %s350 = scalar_lea.sflag [#allocation5], %s349
        %s351 = sand.u32 %s65, 1
        %s352 = smul.addr %s351, 8
        %s353 = scalar_lea.vmem [#allocation4], %s352
        %p354 = pneg %p78
        %p355 = pneg %p75
        %s356 = sand.u32 %s27, 1
        %s357 = scalar_lea.sflag [#allocation8], %s356
        %s358 = sand.u32 %s95, 1
        %s359 = smul.addr %s358, 64
        %s360 = scalar_lea.vmem [#allocation7], %s359
        %p361 = pneg %p108
        %p362 = pneg %p105
        %s363 = sand.u32 %s27, 1
        %s364 = scalar_lea.sflag [#allocation8], %s363
        %s365 = sand.u32 %s123, 1
        %s366 = smul.addr %s365, 64
        %s367 = scalar_lea.vmem [#allocation9], %s366
        %p368 = pneg %p136
        %p369 = pneg %p133
        %s370 = sand.u32 %s151, 1
        %s371 = scalar_lea.sflag [#allocation11], %s370
        %s372 = sand.u32 %s151, 1
        %s373 = smul.addr %s372, 64
        %s374 = scalar_lea.vmem [#allocation10], %s373
        %p375 = pneg %p164
        %p376 = pneg %p161
        %p377 = pneg %p194
        %p378 = pneg %p191
        %s379 = sand.u32 %s181, 1
        %s380 = scalar_lea.sflag [#allocation6], %s379
        %s381 = sand.u32 %s181, 1
        %s382 = smul.addr %s381, 16
        %s383 = scalar_lea.vmem [#allocation12], %s382
        %s384 = smul.u32 2, %s34
        %s385 = smul.u32 16, %s36
        %s386 = smul.u32 16, %s36
        %s387 = smul.u32 2, %s34
        %p389 = scmp.eq.s32.totalorder %s36, 0
        // Predicated region
        $region53: #{tpu_custom_call.1} parent=35 // pred_check
          %p390 = pneg %p389
        $region54: #{tpu_custom_call.1} parent=35 // pred_check_branch
          %392 = sbr.rel (%p390) target = $region56
        $region55: #{tpu_custom_call.1} parent=35 // pred_region
          %393 = vst [vmem:[#allocation2] sm:$0xff] 0.0
          %394 = vst [vmem:[#allocation2 + $0x8] sm:$0xff] 0.0
        $region56: #{tpu_custom_call.1} parent=35 // pred_fallthru
          _
        %p395 = scmp.eq.s32.totalorder %s35, 0
        %p396 = pnand %p395, %p389
        %p397 = pneg %p396
        // Predicated region
        $region57: #{tpu_custom_call.1} parent=35 // pred_check
          _
        $region58: #{tpu_custom_call.1} parent=35 // pred_check_branch
          %399 = sbr.rel (%p396) target = $region60
        $region59: #{tpu_custom_call.1} parent=35 // pred_region
          %400 = vst [vmem:[#allocation3] sm:$0xff] 0.0
          %401 = vst [vmem:[#allocation3 + $0x8] sm:$0xff] 0.0
        $region60: #{tpu_custom_call.1} parent=35 // pred_fallthru
          _
        %v402 = vld [vmem:[%s317] sm:$0xf]
        %v403 = vld [vmem:[%s317 + $0x4] sm:$0xf]
        %v404 = vld [vmem:[#allocation2] sm:$0xff]
        %v405 = vld [vmem:[#allocation2 + $0x8] sm:$0xff]
        %v406 = vld [vmem:[%s326] sm:$0xf]
        %v407 = vld [vmem:[%s326 + $0x4] sm:$0xf]
        %v408 = vld [vmem:[%s326 + $0x8] sm:$0xf]
        %v409 = vld [vmem:[%s326 + $0xc] sm:$0xf]
        %v410 = vld [vmem:[%s326 + $0x10] sm:$0xf]
        %v411 = vld [vmem:[%s326 + $0x14] sm:$0xf]
        %v412 = vld [vmem:[%s326 + $0x18] sm:$0xf]
        %v413 = vld [vmem:[%s326 + $0x1c] sm:$0xf]
        %v414 = vld [vmem:[%s326 + $0x20] sm:$0xf]
        %v415 = vld [vmem:[%s326 + $0x24] sm:$0xf]
        %v416 = vld [vmem:[%s326 + $0x28] sm:$0xf]
        %v417 = vld [vmem:[%s326 + $0x2c] sm:$0xf]
        %v418 = vld [vmem:[%s326 + $0x30] sm:$0xf]
        %v419 = vld [vmem:[%s326 + $0x34] sm:$0xf]
        %v420 = vld [vmem:[%s326 + $0x38] sm:$0xf]
        %v421 = vld [vmem:[%s326 + $0x3c] sm:$0xf]
        %v424 = vunpack.c.l.b16 %v402
        %v425 = vunpack.c.l.b16 %v403
        %v426 = vpack.c.b16 %v425, %v424
        %v444 = vunpack.c.l.b16 %v406
        %v445 = vunpack.c.l.b16 %v407
        %v446 = vunpack.c.l.b16 %v408
        %v447 = vunpack.c.l.b16 %v409
        %v448 = vunpack.c.l.b16 %v410
        %v449 = vunpack.c.l.b16 %v411
        %v450 = vunpack.c.l.b16 %v412
        %v451 = vunpack.c.l.b16 %v413
        %v452 = vunpack.c.l.b16 %v414
        %v453 = vunpack.c.l.b16 %v415
        %v454 = vunpack.c.l.b16 %v416
        %v455 = vunpack.c.l.b16 %v417
        %v456 = vunpack.c.l.b16 %v418
        %v457 = vunpack.c.l.b16 %v419
        %v458 = vunpack.c.l.b16 %v420
        %v459 = vunpack.c.l.b16 %v421
        %v460 = vpack.c.b16 %v445, %v444
        %v461 = vpack.c.b16 %v447, %v446
        %v462 = vpack.c.b16 %v449, %v448
        %v463 = vpack.c.b16 %v451, %v450
        %v464 = vpack.c.b16 %v453, %v452
        %v465 = vpack.c.b16 %v455, %v454
        %v466 = vpack.c.b16 %v457, %v456
        %v467 = vpack.c.b16 %v459, %v458
        %476 = vmatprep.subr.bf16.mxu0 0
        %477 = vmatpush1.bf16.msra.mxu0 %v460
        %478 = vmatprep.subr.bf16.mxu0 0
        %479 = vmatpush1.bf16.msra.mxu0 %v461
        %480 = vmatprep.subr.bf16.mxu0 0
        %481 = vmatpush1.bf16.msra.mxu0 %v462
        %482 = vmatprep.subr.bf16.mxu0 0
        %483 = vmatpush1.bf16.msra.mxu0 %v463
        %484 = vmatprep.subr.bf16.mxu0 0
        %485 = vmatpush1.bf16.msra.mxu0 %v464
        %486 = vmatprep.subr.bf16.mxu0 0
        %487 = vmatpush1.bf16.msra.mxu0 %v465
        %488 = vmatprep.subr.bf16.mxu0 0
        %489 = vmatpush1.bf16.msra.mxu0 %v466
        %490 = vmatprep.subr.bf16.mxu0 0
        %491 = vmatpush1.bf16.msra.mxu0 %v467
        %492 = vmatprep.subr.bf16.mxu0 0
        %493 = vmatpush1.bf16.msra.mxu0 0
        %494 = vmatprep.subr.bf16.mxu0 0
        %495 = vmatpush1.bf16.msra.mxu0 0
        %496 = vmatprep.subr.bf16.mxu0 0
        %497 = vmatpush1.bf16.msra.mxu0 0
        %498 = vmatprep.subr.bf16.mxu0 0
        %499 = vmatpush1.bf16.msra.mxu0 0
        %500 = vmatprep.subr.bf16.mxu0 0
        %501 = vmatpush1.bf16.msra.mxu0 0
        %502 = vmatprep.subr.bf16.mxu0 0
        %503 = vmatpush1.bf16.msra.mxu0 0
        %504 = vmatprep.subr.bf16.mxu0 0
        %505 = vmatpush1.bf16.msra.mxu0 0
        %506 = vmatprep.subr.bf16.mxu0 0
        %507 = vmatpush1.bf16.msra.mxu0 0
        %508 = vmatprep.mubr.bf16.mxu0 0
        %509 = vmatmul.mubr.bf16.gmra.mrb[0].mxu0 %v426
        %v510 = vpop.f32.mrb[0].mxu0
        %v511 = vadd.f32 0.0, %v510
        %v512 = vpop.f32.mrb[0].mxu0
        %v513 = vpop.f32.mrb[0].mxu0
        %v514 = vadd.f32 0.0, %v513
        %v515 = vpop.f32.mrb[0].mxu0
        %516 = vdwg.mxu0
        %v517 = vadd.f32 %v404, %v511
        %v518 = vadd.f32 %v405, %v514
        %519 = vst [vmem:[#allocation2] sm:$0xff] %v517
        %520 = vst [vmem:[#allocation2 + $0x8] sm:$0xff] %v518
        // Predicated region
        $region61: #{tpu_custom_call.1} parent=35 // pred_check
          %p521 = pneg %p395
        $region62: #{tpu_custom_call.1} parent=35 // pred_check_branch
          %523 = sbr.rel (%p521) target = $region64
        $region63: #{tpu_custom_call.1} parent=35 // pred_region
          %v524 = vld [vmem:[#allocation3] sm:$0xff]
          %v525 = vld [vmem:[#allocation3 + $0x8] sm:$0xff]
          %v526 = vld [vmem:[%s335] sm:$0xf]
          %v527 = vld [vmem:[%s335 + $0x4] sm:$0xf]
          %v528 = vld [vmem:[%s335 + $0x8] sm:$0xf]
          %v529 = vld [vmem:[%s335 + $0xc] sm:$0xf]
          %v530 = vld [vmem:[%s335 + $0x10] sm:$0xf]
          %v531 = vld [vmem:[%s335 + $0x14] sm:$0xf]
          %v532 = vld [vmem:[%s335 + $0x18] sm:$0xf]
          %v533 = vld [vmem:[%s335 + $0x1c] sm:$0xf]
          %v534 = vld [vmem:[%s335 + $0x20] sm:$0xf]
          %v535 = vld [vmem:[%s335 + $0x24] sm:$0xf]
          %v536 = vld [vmem:[%s335 + $0x28] sm:$0xf]
          %v537 = vld [vmem:[%s335 + $0x2c] sm:$0xf]
          %v538 = vld [vmem:[%s335 + $0x30] sm:$0xf]
          %v539 = vld [vmem:[%s335 + $0x34] sm:$0xf]
          %v540 = vld [vmem:[%s335 + $0x38] sm:$0xf]
          %v541 = vld [vmem:[%s335 + $0x3c] sm:$0xf]
          %v558 = vunpack.c.l.b16 %v526
          %v559 = vunpack.c.l.b16 %v527
          %v560 = vunpack.c.l.b16 %v528
          %v561 = vunpack.c.l.b16 %v529
          %v562 = vunpack.c.l.b16 %v530
          %v563 = vunpack.c.l.b16 %v531
          %v564 = vunpack.c.l.b16 %v532
          %v565 = vunpack.c.l.b16 %v533
          %v566 = vunpack.c.l.b16 %v534
          %v567 = vunpack.c.l.b16 %v535
          %v568 = vunpack.c.l.b16 %v536
          %v569 = vunpack.c.l.b16 %v537
          %v570 = vunpack.c.l.b16 %v538
          %v571 = vunpack.c.l.b16 %v539
          %v572 = vunpack.c.l.b16 %v540
          %v573 = vunpack.c.l.b16 %v541
          %v574 = vpack.c.b16 %v559, %v558
          %v575 = vpack.c.b16 %v561, %v560
          %v576 = vpack.c.b16 %v563, %v562
          %v577 = vpack.c.b16 %v565, %v564
          %v578 = vpack.c.b16 %v567, %v566
          %v579 = vpack.c.b16 %v569, %v568
          %v580 = vpack.c.b16 %v571, %v570
          %v581 = vpack.c.b16 %v573, %v572
          %590 = vmatprep.subr.bf16.mxu0 0
          %591 = vmatpush1.bf16.msra.mxu0 %v574
          %592 = vmatprep.subr.bf16.mxu0 0
          %593 = vmatpush1.bf16.msra.mxu0 %v575
          %594 = vmatprep.subr.bf16.mxu0 0
          %595 = vmatpush1.bf16.msra.mxu0 %v576
          %596 = vmatprep.subr.bf16.mxu0 0
          %597 = vmatpush1.bf16.msra.mxu0 %v577
          %598 = vmatprep.subr.bf16.mxu0 0
          %599 = vmatpush1.bf16.msra.mxu0 %v578
          %600 = vmatprep.subr.bf16.mxu0 0
          %601 = vmatpush1.bf16.msra.mxu0 %v579
          %602 = vmatprep.subr.bf16.mxu0 0
          %603 = vmatpush1.bf16.msra.mxu0 %v580
          %604 = vmatprep.subr.bf16.mxu0 0
          %605 = vmatpush1.bf16.msra.mxu0 %v581
          %606 = vmatprep.subr.bf16.mxu0 0
          %607 = vmatpush1.bf16.msra.mxu0 0
          %608 = vmatprep.subr.bf16.mxu0 0
          %609 = vmatpush1.bf16.msra.mxu0 0
          %610 = vmatprep.subr.bf16.mxu0 0
          %611 = vmatpush1.bf16.msra.mxu0 0
          %612 = vmatprep.subr.bf16.mxu0 0
          %613 = vmatpush1.bf16.msra.mxu0 0
          %614 = vmatprep.subr.bf16.mxu0 0
          %615 = vmatpush1.bf16.msra.mxu0 0
          %616 = vmatprep.subr.bf16.mxu0 0
          %617 = vmatpush1.bf16.msra.mxu0 0
          %618 = vmatprep.subr.bf16.mxu0 0
          %619 = vmatpush1.bf16.msra.mxu0 0
          %620 = vmatprep.subr.bf16.mxu0 0
          %621 = vmatpush1.bf16.msra.mxu0 0
          %622 = vmatprep.mubr.bf16.mxu0 0
          %623 = vmatmul.mubr.bf16.gmra.mrb[0].mxu0 %v426
          %v624 = vpop.f32.mrb[0].mxu0
          %v625 = vadd.f32 0.0, %v624
          %v626 = vpop.f32.mrb[0].mxu0
          %v627 = vpop.f32.mrb[0].mxu0
          %v628 = vadd.f32 0.0, %v627
          %v629 = vpop.f32.mrb[0].mxu0
          %630 = vdwg.mxu0
          %v631 = vadd.f32 %v524, %v625
          %v632 = vadd.f32 %v525, %v628
          %633 = vst [vmem:[#allocation3] sm:$0xff] %v631
          %634 = vst [vmem:[#allocation3 + $0x8] sm:$0xff] %v632
        $region64: #{tpu_custom_call.1} parent=35 // pred_fallthru
          _
        // Predicated region
        $region65: #{tpu_custom_call.1} parent=35 // pred_check
          %p635 = pneg %p389
        $region66: #{tpu_custom_call.1} parent=35 // pred_check_branch
          %637 = sbr.rel (%p635) target = $region68
        $region67: #{tpu_custom_call.1} parent=35 // pred_region
          %v638 = vld [vmem:[#allocation3] sm:$0xff]
          %v639 = vld [vmem:[#allocation3 + $0x8] sm:$0xff]
          %v640 = vmul.f32 %v638, 2.0
          %v641 = vmul.f32 %v639, 2.0
          %v642 = vpack.c.bf16 %v641, %v640
          %v643 = vld [vmem:[%s344] sm:$0xf]
          %v644 = vld [vmem:[%s344 + $0x4] sm:$0xf]
          %v645 = vld [vmem:[%s344 + $0x8] sm:$0xf]
          %v646 = vld [vmem:[%s344 + $0xc] sm:$0xf]
          %v647 = vld [vmem:[%s344 + $0x10] sm:$0xf]
          %v648 = vld [vmem:[%s344 + $0x14] sm:$0xf]
          %v649 = vld [vmem:[%s344 + $0x18] sm:$0xf]
          %v650 = vld [vmem:[%s344 + $0x1c] sm:$0xf]
          %v651 = vld [vmem:[%s344 + $0x20] sm:$0xf]
          %v652 = vld [vmem:[%s344 + $0x24] sm:$0xf]
          %v653 = vld [vmem:[%s344 + $0x28] sm:$0xf]
          %v654 = vld [vmem:[%s344 + $0x2c] sm:$0xf]
          %v655 = vld [vmem:[%s344 + $0x30] sm:$0xf]
          %v656 = vld [vmem:[%s344 + $0x34] sm:$0xf]
          %v657 = vld [vmem:[%s344 + $0x38] sm:$0xf]
          %v658 = vld [vmem:[%s344 + $0x3c] sm:$0xf]
          %v675 = vunpack.c.l.b16 %v643
          %v676 = vunpack.c.l.b16 %v644
          %v677 = vunpack.c.l.b16 %v645
          %v678 = vunpack.c.l.b16 %v646
          %v679 = vunpack.c.l.b16 %v647
          %v680 = vunpack.c.l.b16 %v648
          %v681 = vunpack.c.l.b16 %v649
          %v682 = vunpack.c.l.b16 %v650
          %v683 = vunpack.c.l.b16 %v651
          %v684 = vunpack.c.l.b16 %v652
          %v685 = vunpack.c.l.b16 %v653
          %v686 = vunpack.c.l.b16 %v654
          %v687 = vunpack.c.l.b16 %v655
          %v688 = vunpack.c.l.b16 %v656
          %v689 = vunpack.c.l.b16 %v657
          %v690 = vunpack.c.l.b16 %v658
          %v691 = vpack.c.b16 %v676, %v675
          %v692 = vpack.c.b16 %v678, %v677
          %v693 = vpack.c.b16 %v680, %v679
          %v694 = vpack.c.b16 %v682, %v681
          %v695 = vpack.c.b16 %v684, %v683
          %v696 = vpack.c.b16 %v686, %v685
          %v697 = vpack.c.b16 %v688, %v687
          %v698 = vpack.c.b16 %v690, %v689
          %707 = vmatprep.subr.bf16.mxu0 0
          %708 = vmatpush1.bf16.msra.mxu0 %v691
          %709 = vmatprep.subr.bf16.mxu0 0
          %710 = vmatpush1.bf16.msra.mxu0 %v692
          %711 = vmatprep.subr.bf16.mxu0 0
          %712 = vmatpush1.bf16.msra.mxu0 %v693
          %713 = vmatprep.subr.bf16.mxu0 0
          %714 = vmatpush1.bf16.msra.mxu0 %v694
          %715 = vmatprep.subr.bf16.mxu0 0
          %716 = vmatpush1.bf16.msra.mxu0 %v695
          %717 = vmatprep.subr.bf16.mxu0 0
          %718 = vmatpush1.bf16.msra.mxu0 %v696
          %719 = vmatprep.subr.bf16.mxu0 0
          %720 = vmatpush1.bf16.msra.mxu0 %v697
          %721 = vmatprep.subr.bf16.mxu0 0
          %722 = vmatpush1.bf16.msra.mxu0 %v698
          %723 = vmatprep.subr.bf16.mxu0 0
          %724 = vmatpush1.bf16.msra.mxu0 0
          %725 = vmatprep.subr.bf16.mxu0 0
          %726 = vmatpush1.bf16.msra.mxu0 0
          %727 = vmatprep.subr.bf16.mxu0 0
          %728 = vmatpush1.bf16.msra.mxu0 0
          %729 = vmatprep.subr.bf16.mxu0 0
          %730 = vmatpush1.bf16.msra.mxu0 0
          %731 = vmatprep.subr.bf16.mxu0 0
          %732 = vmatpush1.bf16.msra.mxu0 0
          %733 = vmatprep.subr.bf16.mxu0 0
          %734 = vmatpush1.bf16.msra.mxu0 0
          %735 = vmatprep.subr.bf16.mxu0 0
          %736 = vmatpush1.bf16.msra.mxu0 0
          %737 = vmatprep.subr.bf16.mxu0 0
          %738 = vmatpush1.bf16.msra.mxu0 0
          %739 = vmatprep.mubr.bf16.mxu0 0
          %740 = vmatmul.mubr.bf16.gmra.mrb[0].mxu0 %v642
          %v741 = vpop.f32.mrb[0].mxu0
          %v742 = vadd.f32 0.0, %v741
          %v743 = vpop.f32.mrb[0].mxu0
          %v744 = vpop.f32.mrb[0].mxu0
          %v745 = vadd.f32 0.0, %v744
          %v746 = vpop.f32.mrb[0].mxu0
          %747 = vdwg.mxu0
          %v748 = vld [vmem:[#allocation2] sm:$0xff]
          %v749 = vld [vmem:[#allocation2 + $0x8] sm:$0xff]
          %v750 = vadd.f32 %v748, %v742
          %v751 = vadd.f32 %v749, %v745
          %752 = vst [vmem:[%s383] sm:$0xff] %v750
          %753 = vst [vmem:[%s383 + $0x8] sm:$0xff] %v751
        $region68: #{tpu_custom_call.1} parent=35 // pred_fallthru
          _
        %s754 = sand.u32 %s181, 1
        %s755 = scalar_lea.sflag [#allocation6], %s754
        %s756 = sand.u32 %s181, 1
        %s757 = smul.addr %s756, 16
        %s758 = scalar_lea.vmem [#allocation12], %s757
        // Predicated region
        $region69: #{tpu_custom_call.1} parent=35 // pred_check
          %p759 = pneg %p191
        $region70: #{tpu_custom_call.1} parent=35 // pred_check_branch
          %761 = sbr.rel (%p759) target = $region72
        $region71: #{tpu_custom_call.1} parent=35 // pred_region
          %s762 = smul.u32 2, %s34
          %s764 = ssub.s32 256, 256
          %765 = vsyncadd %s755, %s764
          %s766 = sadd.s32 %s35, %s762
          %s767 = smul.addr %s33, 2
          %s768 = sadd.s32 %s766, %s767
          %s769 = smul.addr %s768, 128
          %s770 = scalar_lea.hbm %s4, %s769
          %s771 = sshll.u32 %s758, 4
          %s772 = int_to_ptr.vmem [resolvable:$true] %s771
          %777 = dma.vmem_to_hbm [thread:$0]  %s772, 256, %s770, %s755, 128, 128, 8
        $region72: #{tpu_custom_call.1} parent=35 // pred_fallthru
          _
      $region36: #{tpu_custom_call.1} parent=5 // pred_fallthru
        _
      %p778 = scmp.le.s32.totalorder 2, %s22
      // Predicated region
      $region73: #{tpu_custom_call.1} parent=5 // pred_check
        %p779 = pneg %p778
      $region74: #{tpu_custom_call.1} parent=5 // pred_check_branch
        %781 = sbr.rel (%p779) target = $region76
      $region75: #{tpu_custom_call.1} parent=5 // pred_region
        %s782 = ssub.s32 %s22, 2
        // Predicated region
        $region77: #{tpu_custom_call.1} parent=75 // pred_check
          %p783 = pneg %p197
        $region78: #{tpu_custom_call.1} parent=75 // pred_check_branch
          %785 = sbr.rel (%p783) target = $region80
        $region79: #{tpu_custom_call.1} parent=75 // pred_region
          %s786 = sand.u32 %s182, 1
          %s787 = scalar_lea.sflag [#allocation6], %s786
          %s788 = sand.u32 %s182, 1
          %s789 = smul.addr %s788, 16
          %s790 = scalar_lea.vmem [#allocation12], %s789
          %791 = dma.done %s787, 256
        $region80: #{tpu_custom_call.1} parent=75 // pred_fallthru
          _
      $region76: #{tpu_custom_call.1} parent=5 // pred_fallthru
        _
    $region6: #{tpu_custom_call.1} parent=1 // loop_footer
      %s26 = sadd.s32 1, %s22
    $region7: #{tpu_custom_call.1} parent=1 // loop_footer_branch
      %21 = sbr.rel target = $region3
    $region8: #{tpu_custom_call.1} parent=1 // loop_exit
      _
    %792 = vsyncpa [#allocation5], 1
    %s793 = scalar_lea.sflag [#allocation5], 1
    %794 = vsyncpa %s793, 1
    %795 = vsyncpa [#allocation8], 1
    %s796 = scalar_lea.sflag [#allocation8], 1
    %797 = vsyncpa %s796, 1
    %798 = vsyncpa [#allocation11], 1
    %s799 = scalar_lea.sflag [#allocation11], 1
    %800 = vsyncpa %s799, 1
    %801 = vsyncpa [#allocation6], 1
    %s802 = scalar_lea.sflag [#allocation6], 1
    %803 = vsyncpa %s802, 1

</llo_original>
